<compile_context>
chip_gen: v7x
topology: tpu7x:2x2x1
jax: 0.10.0
libtpu: 0.0.40
codegen_flags: <defaults>
</compile_context>

<pallas_src>
import functools
import math

import jax
import jax.numpy as jnp
from jax import lax
from jax.experimental import pallas as pl
from jax.experimental.pallas import tpu as pltpu


# ------------------------------ small helpers ------------------------------

@functools.lru_cache(maxsize=None)
def _vmem_safe_limit():
    """Safe cap for vmem_limit_bytes: physical VMEM minus 16 MiB headroom.

    v5e/v6e (128 MiB) -> capped at 96 MiB; v7x (64 MiB) -> 48 MiB.
    """
    try:
        cap = int(pltpu.get_tpu_info().vmem_capacity_bytes)
    except Exception:
        cap = 64 << 20                       # assume the smallest generation (v7x)
    return int(max(32 << 20, min(cap - (16 << 20), 96 << 20)))


def _cparams(semantics, streamed=(), resident=()):
    """CompilerParams with a VMEM limit derived from the block shapes.

    `streamed` blocks are double-buffered by the pipeline (x2); `resident`
    (constant-index blocks, scratch accumulators) are counted once.
    """
    def nbytes(blocks):
        return sum(math.prod(s) * jnp.dtype(d).itemsize for s, d in blocks)
    est = 2 * nbytes(streamed) + nbytes(resident) + (4 << 20)
    limit = int(min(max(est, 32 << 20), _vmem_safe_limit()))
    return pltpu.CompilerParams(dimension_semantics=semantics, vmem_limit_bytes=limit)


def _pick_tile(dim, cap, align, fallback_align=None):
    """Largest divisor of `dim` <= cap that is a multiple of `align` (then
    `fallback_align`); otherwise the full dim (always a legal block)."""
    if dim <= cap:
        return dim
    aligns = [align] + ([fallback_align] if fallback_align else [])
    for a in aligns:
        t = (cap // a) * a
        while t >= a:
            if dim % t == 0:
                return t
            t -= a
    return dim


def _heads_per_group(n_heads, d_head):
    """Smallest head group whose lane width (hpg*d_head) is a 128 multiple and
    divides n_heads; falls back to all heads (full-width block, always legal)."""
    for hpg in range(1, n_heads):
        if n_heads % hpg == 0 and (hpg * d_head) % 128 == 0:
            return hpg
    return n_heads


def _gelu_f32(y):
    # tanh approximation of GELU (f32 math — no bf16 VPU/EUP on v5e).
    # TODO(synk): HuggingFace LUKE "gelu" is the exact erf form; tanh approx kept here.
    return 0.5 * y * (1.0 + jnp.tanh(0.7978845608028654 * (y + 0.044715 * y * y * y)))


def _ln_f32(y, g, b, eps):
    mu = jnp.mean(y, axis=-1, keepdims=True)
    var = jnp.mean((y - mu) ** 2, axis=-1, keepdims=True)
    return (y - mu) * lax.rsqrt(var + eps) * g + b


# ----------------------------- Pallas kernels ------------------------------

def _matmul_kernel(x_ref, w_ref, b_ref, o_ref, acc_ref):
    """Tiled matmul with K-axis accumulation: o = x @ w + b."""
    @pl.when(pl.program_id(2) == 0)
    def _():
        acc_ref[...] = jnp.zeros_like(acc_ref)

    acc_ref[...] += jnp.dot(x_ref[...], w_ref[...], preferred_element_type=jnp.float32)

    @pl.when(pl.program_id(2) == pl.num_programs(2) - 1)
    def _():
        o_ref[...] = (acc_ref[...] + b_ref[...]).astype(o_ref.dtype)


def linear(x2d, w, b, *, out_dtype=jnp.bfloat16):
    """Tiled bf16 matmul: (M,K) @ (K,N) + (N,).  Tiles aligned to 256 (N/K)
    and 16 (M, bf16 sublane packing) to keep the 256-wide MXU occupied."""
    M, K = x2d.shape
    _, N = w.shape
    tm = _pick_tile(M, 512, 128, 16)
    tn = _pick_tile(N, 512, 256, 128)
    tk = _pick_tile(K, 512, 256, 128)
    return pl.pallas_call(
        _matmul_kernel,
        out_shape=jax.ShapeDtypeStruct((M, N), out_dtype),
        grid=(M // tm, N // tn, K // tk),
        in_specs=[
            pl.BlockSpec((tm, tk), lambda i, j, k: (i, k)),
            pl.BlockSpec((tk, tn), lambda i, j, k: (k, j)),
            pl.BlockSpec((1, tn), lambda i, j, k: (0, j)),
        ],
        out_specs=pl.BlockSpec((tm, tn), lambda i, j, k: (i, j)),
        scratch_shapes=[pltpu.VMEM((tm, tn), jnp.float32)],
        compiler_params=_cparams(
            ("parallel", "parallel", "arbitrary"),
            streamed=[((tm, tk), x2d.dtype), ((tk, tn), w.dtype), ((tm, tn), out_dtype)],
            resident=[((1, tn), b.dtype), ((tm, tn), jnp.float32)]),
    )(x2d, w, b.reshape(1, N))


def _ln_kernel(x_ref, g_ref, b_ref, o_ref, *, eps):
    y = x_ref[...].astype(jnp.float32)
    o_ref[...] = _ln_f32(y, g_ref[...], b_ref[...], eps).astype(o_ref.dtype)


def layernorm(x2d, gamma, beta, *, eps=1e-12, out_dtype=jnp.bfloat16):
    M, H = x2d.shape
    tm = _pick_tile(M, 256, 16, 8)
    return pl.pallas_call(
        functools.partial(_ln_kernel, eps=eps),
        out_shape=jax.ShapeDtypeStruct((M, H), out_dtype),
        grid=(M // tm,),
        in_specs=[
            pl.BlockSpec((tm, H), lambda i: (i, 0)),
            pl.BlockSpec((1, H), lambda i: (0, 0)),
            pl.BlockSpec((1, H), lambda i: (0, 0)),
        ],
        out_specs=pl.BlockSpec((tm, H), lambda i: (i, 0)),
        compiler_params=_cparams(
            ("parallel",),
            streamed=[((tm, H), x2d.dtype), ((tm, H), out_dtype)],
            resident=[((1, H), jnp.float32), ((1, H), jnp.float32)]),
    )(x2d, gamma.reshape(1, H), beta.reshape(1, H))


def _attention_kernel(qkv_ref, bias_ref, o_ref, *, hpg, d_head, scale):
    """Softmax attention for one (batch, head-group) grid step.

    qkv_ref block: (1, S, 3*gW) laid out [Q_g | K_g | V_g], gW = hpg*d_head lanes
    each (128-aligned at production sizes), so group loads/stores are lane-dense.
    Each head's context is written straight into its lane slice of o_ref — no
    nH-way lane concat and no all-head unroll.
    """
    qkv = qkv_ref[0]                 # (S, 3*gW), bf16
    bias = bias_ref[0]               # (1, S) f32 additive mask (-1e9 on padded keys)
    gw = hpg * d_head
    for h in range(hpg):
        # Fold 1/sqrt(d_head) into q: S*dH multiplies instead of S*S.
        q = qkv[:, h * d_head:(h + 1) * d_head] * scale
        k = qkv[:, gw + h * d_head:gw + (h + 1) * d_head]
        v = qkv[:, 2 * gw + h * d_head:2 * gw + (h + 1) * d_head]
        s = lax.dot_general(q, k, (((1,), (1,)), ((), ())),
                            preferred_element_type=jnp.float32) + bias     # (S, S)
        m = jnp.max(s, axis=-1, keepdims=True)
        p = jnp.exp(s - m)
        p = p * pl.reciprocal(jnp.sum(p, axis=-1, keepdims=True), approx=True)
        ctx = jnp.dot(p.astype(v.dtype), v, preferred_element_type=jnp.float32)
        o_ref[0, :, h * d_head:(h + 1) * d_head] = ctx.astype(o_ref.dtype)


def attention(qkv3d, attn_bias, n_heads, d_head):
    """qkv3d: (B, S, 3H) with group-major lane layout [Qg|Kg|Vg] per head group.
    attn_bias: (B, 1, S) f32 additive key mask.  Grid = (batch, head-group).
    TODO(synk): for very long S add a KV-block axis with flash-style online softmax.
    """
    B, S, threeH = qkv3d.shape
    H = n_heads * d_head
    hpg = _heads_per_group(n_heads, d_head)
    G = n_heads // hpg
    gW = hpg * d_head
    scale = 1.0 / math.sqrt(d_head)
    return pl.pallas_call(
        functools.partial(_attention_kernel, hpg=hpg, d_head=d_head, scale=scale),
        out_shape=jax.ShapeDtypeStruct((B, S, H), jnp.bfloat16),
        grid=(B, G),
        in_specs=[
            pl.BlockSpec((1, S, 3 * gW), lambda b, g: (b, 0, g)),
            pl.BlockSpec((1, 1, S), lambda b, g: (b, 0, 0)),
        ],
        out_specs=pl.BlockSpec((1, S, gW), lambda b, g: (b, 0, g)),
        compiler_params=_cparams(
            ("parallel", "parallel"),
            streamed=[((1, S, 3 * gW), qkv3d.dtype), ((1, S, gW), jnp.bfloat16)],
            resident=[((1, 1, S), jnp.float32)]),
    )(qkv3d, attn_bias)


def _proj_res_ln_kernel(ctx_ref, w_ref, b_ref, r_ref, g_ref, bln_ref, o_ref, *, eps):
    """out = LayerNorm(residual + ctx @ Wo + bo)."""
    y = jnp.dot(ctx_ref[...], w_ref[...], preferred_element_type=jnp.float32) + b_ref[...]
    y = y + r_ref[...].astype(jnp.float32)
    o_ref[...] = _ln_f32(y, g_ref[...], bln_ref[...], eps).astype(o_ref.dtype)


def proj_res_ln(ctx2d, w, b, res2d, gamma, beta, *, eps=1e-12, out_dtype=jnp.bfloat16):
    M, K = ctx2d.shape
    _, N = w.shape
    tm = _pick_tile(M, 256, 16, 8)           # bound the (tm, N) f32 pre-LN slab
    return pl.pallas_call(
        functools.partial(_proj_res_ln_kernel, eps=eps),
        out_shape=jax.ShapeDtypeStruct((M, N), out_dtype),
        grid=(M // tm,),
        in_specs=[
            pl.BlockSpec((tm, K), lambda i: (i, 0)),
            pl.BlockSpec((K, N), lambda i: (0, 0)),
            pl.BlockSpec((1, N), lambda i: (0, 0)),
            pl.BlockSpec((tm, N), lambda i: (i, 0)),
            pl.BlockSpec((1, N), lambda i: (0, 0)),
            pl.BlockSpec((1, N), lambda i: (0, 0)),
        ],
        out_specs=pl.BlockSpec((tm, N), lambda i: (i, 0)),
        compiler_params=_cparams(
            ("parallel",),
            streamed=[((tm, K), ctx2d.dtype), ((tm, N), res2d.dtype), ((tm, N), out_dtype)],
            resident=[((K, N), w.dtype), ((1, N), jnp.float32),
                      ((1, N), jnp.float32), ((1, N), jnp.float32)]),
    )(ctx2d, w, b.reshape(1, N), res2d, gamma.reshape(1, N), beta.reshape(1, N))


def _ffn_res_ln_kernel(x_ref, wi_ref, bi_ref, wo_ref, bo_ref, g_ref, bln_ref,
                       o_ref, acc_ref, *, eps):
    """out = LayerNorm(x + GELU(x @ Wi + bi) @ Wo2 + bo2).

    The intermediate dim I is streamed over grid axis 1 with an f32 VMEM
    accumulator — the weights are never whole-resident and the live f32 GELU
    slab is bounded to (tm, ti).
    """
    i = pl.program_id(1)

    @pl.when(i == 0)
    def _():
        acc_ref[...] = jnp.zeros_like(acc_ref)

    x = x_ref[...]                                                     # (tm, H) bf16
    h = jnp.dot(x, wi_ref[...], preferred_element_type=jnp.float32) + bi_ref[...]
    h = _gelu_f32(h)                                                   # (tm, ti) f32
    acc_ref[...] += jnp.dot(h.astype(wo_ref.dtype), wo_ref[...],
                            preferred_element_type=jnp.float32)

    @pl.when(i == pl.num_programs(1) - 1)
    def _():
        y = acc_ref[...] + bo_ref[...] + x_ref[...].astype(jnp.float32)
        o_ref[...] = _ln_f32(y, g_ref[...], bln_ref[...], eps).astype(o_ref.dtype)


def ffn_res_ln(x2d, wi, bi, wo2, bo2, gamma, beta, *, eps=1e-12, out_dtype=jnp.bfloat16):
    M, H = x2d.shape
    _, I = wi.shape
    tm = _pick_tile(M, 256, 128, 16)         # larger tm => fewer weight re-reads
    ti = _pick_tile(I, 512, 256, 128)        # streamed intermediate tile
    return pl.pallas_call(
        functools.partial(_ffn_res_ln_kernel, eps=eps),
        out_shape=jax.ShapeDtypeStruct((M, H), out_dtype),
        grid=(M // tm, I // ti),
        in_specs=[
            pl.BlockSpec((tm, H), lambda m, i: (m, 0)),
            pl.BlockSpec((H, ti), lambda m, i: (0, i)),
            pl.BlockSpec((1, ti), lambda m, i: (0, i)),
            pl.BlockSpec((ti, H), lambda m, i: (i, 0)),
            pl.BlockSpec((1, H), lambda m, i: (0, 0)),
            pl.BlockSpec((1, H), lambda m, i: (0, 0)),
            pl.BlockSpec((1, H), lambda m, i: (0, 0)),
        ],
        out_specs=pl.BlockSpec((tm, H), lambda m, i: (m, 0)),
        scratch_shapes=[pltpu.VMEM((tm, H), jnp.float32)],
        compiler_params=_cparams(
            ("parallel", "arbitrary"),
            streamed=[((tm, H), x2d.dtype), ((H, ti), wi.dtype), ((1, ti), jnp.float32),
                      ((ti, H), wo2.dtype), ((tm, H), out_dtype)],
            resident=[((1, H), jnp.float32)] * 3 + [((tm, H), jnp.float32)]),
    )(x2d, wi, bi.reshape(1, I), wo2, bo2.reshape(1, H),
      gamma.reshape(1, H), beta.reshape(1, H))


def _meanpool_fc_kernel(x_ref, w_ref, b_ref, o_ref, acc_ref, *, inv_s):
    """Running sum over the S axis, finalize mean + fc on the last S step."""
    @pl.when(pl.program_id(1) == 0)
    def _():
        acc_ref[...] = jnp.zeros_like(acc_ref)

    acc_ref[...] += jnp.sum(x_ref[...].astype(jnp.float32), axis=1)

    @pl.when(pl.program_id(1) == pl.num_programs(1) - 1)
    def _():
        feat = acc_ref[...] * inv_s            # == torch.mean(last_hidden_states, 1)
        o_ref[...] = (jnp.dot(feat, w_ref[...], preferred_element_type=jnp.float32)
                      + b_ref[...])


def meanpool_fc(x, w, b):
    """Fused mean-pool over seq + fc head (f32 head; fc_dropout is identity).

    Byte-budgeted (B-blocks, S-blocks) reduction grid so the streamed x block
    always fits VMEM, regardless of S*H."""
    B, S, H = x.shape
    _, T = w.shape
    tb = _pick_tile(B, 64, 8)
    itemsize = jnp.dtype(x.dtype).itemsize
    ts_cap = max(8, (4 << 20) // max(1, tb * H * itemsize))   # ~4 MiB x block
    ts = _pick_tile(S, min(S, ts_cap), 8)
    return pl.pallas_call(
        functools.partial(_meanpool_fc_kernel, inv_s=1.0 / S),
        out_shape=jax.ShapeDtypeStruct((B, T), jnp.float32),
        grid=(B // tb, S // ts),
        in_specs=[
            pl.BlockSpec((tb, ts, H), lambda bb, ss: (bb, ss, 0)),
            pl.BlockSpec((H, T), lambda bb, ss: (0, 0)),
            pl.BlockSpec((1, T), lambda bb, ss: (0, 0)),
        ],
        out_specs=pl.BlockSpec((tb, T), lambda bb, ss: (bb, 0)),
        scratch_shapes=[pltpu.VMEM((tb, H), jnp.float32)],
        compiler_params=_cparams(
            ("parallel", "arbitrary"),
            streamed=[((tb, ts, H), x.dtype)],
            resident=[((H, T), w.dtype), ((1, T), jnp.float32),
                      ((tb, T), jnp.float32), ((tb, H), jnp.float32)]),
    )(x, w, b.reshape(1, T))


# ------------------------------ Model wrapper ------------------------------

def init_params(key, vocab=128, max_pos=64, hidden=32, heads=4, n_layers=2,
                intermediate=64, target_size=1):
    def nrm(k, shape, std=0.02, dtype=jnp.float32):
        return (std * jax.random.normal(k, shape)).astype(dtype)

    keys = iter(jax.random.split(key, 4 + 4 * n_layers))
    params = {
        "cfg": dict(vocab=vocab, hidden=hidden, heads=heads, target_size=target_size),
        "word_emb": nrm(next(keys), (vocab, hidden)),
        "pos_emb": nrm(next(keys), (max_pos, hidden)),
        "type_emb": nrm(next(keys), (2, hidden)),
        "emb_ln_g": jnp.ones((hidden,), jnp.float32),
        "emb_ln_b": jnp.zeros((hidden,), jnp.float32),
        "fc_w": nrm(next(keys), (hidden, target_size)),      # f32 head
        "fc_b": jnp.zeros((target_size,), jnp.float32),
        "layers": [],
    }
    for _ in range(n_layers):
        params["layers"].append({
            # Fused QKV weight with GROUP-MAJOR column layout:
            #   [Q_g0 | K_g0 | V_g0 | Q_g1 | K_g1 | V_g1 | ...]
            # (each region gW = heads_per_group*d_head lanes).  When importing a
            # standard [Q|K|V] checkpoint, permute columns into this order.
            "wqkv": nrm(next(keys), (hidden, 3 * hidden), dtype=jnp.bfloat16),
            "bqkv": jnp.zeros((3 * hidden,), jnp.float32),
            "wo": nrm(next(keys), (hidden, hidden), dtype=jnp.bfloat16),
            "bo": jnp.zeros((hidden,), jnp.float32),
            "ln1_g": jnp.ones((hidden,), jnp.float32),
            "ln1_b": jnp.zeros((hidden,), jnp.float32),
            "wi": nrm(next(keys), (hidden, intermediate), dtype=jnp.bfloat16),
            "bi": jnp.zeros((intermediate,), jnp.float32),
            "wo2": nrm(next(keys), (intermediate, hidden), dtype=jnp.bfloat16),
            "bo2": jnp.zeros((hidden,), jnp.float32),
            "ln2_g": jnp.ones((hidden,), jnp.float32),
            "ln2_b": jnp.zeros((hidden,), jnp.float32),
        })
    return params


def custom_model_forward(params, input_ids, token_type_ids, attention_mask=None):
    """CustomModel.forward: backbone -> mean over seq -> (dropout=id) -> fc."""
    cfg = params["cfg"]
    B, S = input_ids.shape
    H, nH = cfg["hidden"], cfg["heads"]
    dH = H // nH

    if attention_mask is None:
        attention_mask = jnp.ones((B, S), jnp.float32)
    # Additive key-mask bias (padding tokens get -1e9), broadcast over queries/heads.
    attn_bias = ((1.0 - attention_mask.astype(jnp.float32)) * -1e9).reshape(B, 1, S)

    # Embedding gathers are glue (data-dependent gather, plain JAX); LN in Pallas.
    # Feed the LN kernel bf16 (halves its HBM read); LN math stays f32 in-kernel.
    # TODO(synk): LUKE's entity embeddings / entity-aware attention are not modeled.
    x = (jnp.take(params["word_emb"], input_ids, axis=0)
         + params["pos_emb"][None, :S, :]
         + jnp.take(params["type_emb"], token_type_ids, axis=0)).astype(jnp.bfloat16)
    x = layernorm(x.reshape(B * S, H), params["emb_ln_g"], params["emb_ln_b"])

    # TODO(synk): on v5e the QKV projection could be fused into the attention
    # kernel to avoid the (B*S, 3H) HBM round trip.
    for lp in params["layers"]:
        qkv = linear(x, lp["wqkv"], lp["bqkv"])                      # (B*S, 3H), bf16
        ctx = attention(qkv.reshape(B, S, 3 * H), attn_bias, nH, dH)  # (B, S, H), bf16
        x = proj_res_ln(ctx.reshape(B * S, H), lp["wo"], lp["bo"],    # LN1(x + ctx@Wo+bo)
                        x, lp["ln1_g"], lp["ln1_b"])
        x = ffn_res_ln(x, lp["wi"], lp["bi"], lp["wo2"], lp["bo2"],   # LN2(x + FFN(x))
                       lp["ln2_g"], lp["ln2_b"])

    # fc_dropout is identity at inference; mean-pool + fc fused in one kernel.
    # (torch.mean over S includes all positions — matches the reference model.)
    return meanpool_fc(x.reshape(B, S, H), params["fc_w"], params["fc_b"])


if __name__ == "__main__":
    key = jax.random.PRNGKey(0)
    pkey, dkey = jax.random.split(key)
    params = init_params(pkey)

    B, S = 2, 8
    input_ids = jax.random.randint(dkey, (B, S), 0, params["cfg"]["vocab"], dtype=jnp.int32)
    token_type_ids = jnp.zeros((B, S), dtype=jnp.int32)
    attention_mask = jnp.ones((B, S), dtype=jnp.float32)

    out = custom_model_forward(params, input_ids, token_type_ids, attention_mask)
    jax.block_until_ready(out)
    assert out.shape == (B, params["cfg"]["target_size"]), out.shape
    assert out.dtype == jnp.float32
    print("KERNEL_OK")
</pallas_src>

<mosaic_0001>
module attributes {stable_mosaic.version = 11 : i64} {
  func.func @_ln_kernel(%arg0: i32, %arg1: memref<16x32xbf16, #tpu.memory_space<vmem>>, %arg2: memref<1x32xf32, #tpu.memory_space<vmem>>, %arg3: memref<1x32xf32, #tpu.memory_space<vmem>>, %arg4: memref<16x32xbf16, #tpu.memory_space<vmem>>) attributes {dimension_semantics = [#tpu.dimension_semantics<parallel>], iteration_bounds = array<i64: 1>, scalar_prefetch = 0 : i64, scratch_operands = 0 : i64, tpu.core_type = #tpu.core_type<tc>, window_params = [{transform_indices = @transform_0, window_bounds = array<i64: 16, 32>}, {pipeline_mode = #tpu.pipeline_mode<synchronous>, transform_indices = @transform_1, window_bounds = array<i64: 1, 32>}, {pipeline_mode = #tpu.pipeline_mode<synchronous>, transform_indices = @transform_2, window_bounds = array<i64: 1, 32>}, {transform_indices = @transform_3, window_bounds = array<i64: 16, 32>}]} {
    %c0 = arith.constant 0 : index
    %c0_0 = arith.constant 0 : index
    %0 = vector.load %arg1[%c0, %c0_0] : memref<16x32xbf16, #tpu.memory_space<vmem>>, vector<16x32xbf16>
    %1 = arith.extf %0 : vector<16x32xbf16> to vector<16x32xf32>
    %c0_1 = arith.constant 0 : index
    %c0_2 = arith.constant 0 : index
    %2 = vector.load %arg2[%c0_1, %c0_2] : memref<1x32xf32, #tpu.memory_space<vmem>>, vector<1x32xf32>
    %c0_3 = arith.constant 0 : index
    %c0_4 = arith.constant 0 : index
    %3 = vector.load %arg3[%c0_3, %c0_4] : memref<1x32xf32, #tpu.memory_space<vmem>>, vector<1x32xf32>
    %cst = arith.constant dense<0.000000e+00> : vector<16xf32>
    %4 = vector.multi_reduction <add>, %1, %cst [1] : vector<16x32xf32> to vector<16xf32>
    %5 = vector.shape_cast %4 : vector<16xf32> to vector<16x1xf32>
    %cst_5 = arith.constant 3.200000e+01 : f32
    %6 = vector.broadcast %cst_5 : f32 to vector<16x1xf32>
    %7 = arith.divf %5, %6 : vector<16x1xf32>
    %8 = vector.broadcast %7 : vector<16x1xf32> to vector<16x32xf32>
    %9 = arith.subf %1, %8 : vector<16x32xf32>
    %10 = arith.mulf %9, %9 : vector<16x32xf32>
    %cst_6 = arith.constant dense<0.000000e+00> : vector<16xf32>
    %11 = vector.multi_reduction <add>, %10, %cst_6 [1] : vector<16x32xf32> to vector<16xf32>
    %12 = vector.shape_cast %11 : vector<16xf32> to vector<16x1xf32>
    %cst_7 = arith.constant 3.200000e+01 : f32
    %13 = vector.broadcast %cst_7 : f32 to vector<16x1xf32>
    %14 = arith.divf %12, %13 : vector<16x1xf32>
    %15 = vector.broadcast %7 : vector<16x1xf32> to vector<16x32xf32>
    %16 = arith.subf %1, %15 : vector<16x32xf32>
    %cst_8 = arith.constant 9.99999996E-13 : f32
    %17 = vector.broadcast %cst_8 : f32 to vector<16x1xf32>
    %18 = arith.addf %14, %17 : vector<16x1xf32>
    %19 = math.rsqrt %18 : vector<16x1xf32>
    %20 = vector.broadcast %19 : vector<16x1xf32> to vector<16x32xf32>
    %21 = arith.mulf %16, %20 : vector<16x32xf32>
    %22 = vector.broadcast %2 : vector<1x32xf32> to vector<16x32xf32>
    %23 = arith.mulf %21, %22 : vector<16x32xf32>
    %24 = vector.broadcast %3 : vector<1x32xf32> to vector<16x32xf32>
    %25 = arith.addf %23, %24 : vector<16x32xf32>
    %26 = arith.truncf %25 : vector<16x32xf32> to vector<16x32xbf16>
    %c0_9 = arith.constant 0 : index
    %c0_10 = arith.constant 0 : index
    %27 = vector.load %arg4[%c0_9, %c0_10] : memref<16x32xbf16, #tpu.memory_space<vmem>>, vector<16x32xbf16>
    tpu.vector_store %arg4[%c0_9, %c0_10], %26 {strides = array<i32>} : memref<16x32xbf16, #tpu.memory_space<vmem>>, vector<16x32xbf16>,
    return
  }
  func.func @transform_0(%arg0: i32) -> (i32, i32) {
    %c0_i32 = arith.constant 0 : i32
    %c0_i32_0 = arith.constant 0 : i32
    return %arg0, %c0_i32 : i32, i32
  }
  func.func @transform_1(%arg0: i32) -> (i32, i32) {
    %c0_i32 = arith.constant 0 : i32
    %c0_i32_0 = arith.constant 0 : i32
    %c0_i32_1 = arith.constant 0 : i32
    return %c0_i32, %c0_i32_0 : i32, i32
  }
  func.func @transform_2(%arg0: i32) -> (i32, i32) {
    %c0_i32 = arith.constant 0 : i32
    %c0_i32_0 = arith.constant 0 : i32
    %c0_i32_1 = arith.constant 0 : i32
    return %c0_i32, %c0_i32_0 : i32, i32
  }
  func.func @transform_3(%arg0: i32) -> (i32, i32) {
    %c0_i32 = arith.constant 0 : i32
    %c0_i32_0 = arith.constant 0 : i32
    return %arg0, %c0_i32 : i32, i32
  }
}

</mosaic_0001>

<llo_original>
// kernel: tpu_custom_call.1
$region0: #{tpu_custom_call.1}
  #allocation0 [shape = 'u32[]', space=smem, size = 0x4, offset = 0x4, fixed_abs, tag = 'smem constant byte address 0x4 - core index']
  #allocation1 [shape = 'u32[144,128]{1,0:T(1,128)}', space=vmem, size = 0x12000, scoped, tag = 'internal scratch']
  %s0 = inlined_call_operand.hbm [shape: bf16[16,32], index: 0, kind: input, shape index: {}]
  %s1 = inlined_call_operand.vmem [shape: f32[1,32], index: 1, kind: input, shape index: {}]
  %s2 = inlined_call_operand.vmem [shape: f32[1,32], index: 2, kind: input, shape index: {}]
  %s3 = inlined_call_operand.hbm [shape: bf16[16,32], index: 3, kind: output, shape index: {}]
  %s4 = sld [smem:[#allocation0]]
  $region26: #{tpu_custom_call.1} parent=0
    _
  %s6 = ssub.s32 1, %s4
  %s7 = scalar_select 0, %s6, %s4
  $region1: #{tpu_custom_call.1} parent=0
    #allocation2 [shape = 'u8[4096]{0}', space=vmem, size = 0x1000, scoped, tag = 'input window, operand 0, single buffered']
    #allocation3 [shape = 's32[1]{0}', space=sflag, size = 0x4, scoped, tag = 'scoped memory for tpu_custom_call.1']
    #allocation4 [shape = 's32[1]{0}', space=sflag, size = 0x4, scoped, tag = 'scoped memory for tpu_custom_call.1']
    #allocation5 [shape = 'u8[4096]{0}', space=vmem, size = 0x1000, scoped, tag = 'output window, operand 0, single buffered']
    %8 = vsyncpa [#allocation3], 0
    %9 = vsyncpa [#allocation4], 0
    // Predicated region
    $region2: #{tpu_custom_call.1} parent=1 // pred_check
      _
    $region3: #{tpu_custom_call.1} parent=1 // pred_check_branch
      %11 = sbr.rel (0) target = $region5
    $region4: #{tpu_custom_call.1} parent=1 // pred_region
      %s13 = ssub.s32 128, 128
      %14 = vsyncadd [#allocation3], %s13
      %s15 = sshll.u32 [#allocation2], 4
      %s16 = int_to_ptr.vmem [resolvable:$true] %s15
      %21 = dma.hbm_to_vmem [thread:$0]  %s0, 128, %s16, [#allocation3], 64, 64, 4
    $region5: #{tpu_custom_call.1} parent=1 // pred_fallthru
      _
    // Predicated region
    $region6: #{tpu_custom_call.1} parent=1 // pred_check
      _
    $region7: #{tpu_custom_call.1} parent=1 // pred_check_branch
      %23 = sbr.rel (0) target = $region9
    $region8: #{tpu_custom_call.1} parent=1 // pred_region
      _
    $region9: #{tpu_custom_call.1} parent=1 // pred_fallthru
      _
    // Predicated region
    $region10: #{tpu_custom_call.1} parent=1 // pred_check
      _
    $region11: #{tpu_custom_call.1} parent=1 // pred_check_branch
      %25 = sbr.rel (0) target = $region13
    $region12: #{tpu_custom_call.1} parent=1 // pred_region
      _
    $region13: #{tpu_custom_call.1} parent=1 // pred_fallthru
      _
    // Predicated region
    $region14: #{tpu_custom_call.1} parent=1 // pred_check
      _
    $region15: #{tpu_custom_call.1} parent=1 // pred_check_branch
      %27 = sbr.rel (0) target = $region17
    $region16: #{tpu_custom_call.1} parent=1 // pred_region
      %28 = dma.done [#allocation3], 128
    $region17: #{tpu_custom_call.1} parent=1 // pred_fallthru
      _
    %v29 = vld [vmem:[#allocation2] sm:$0xf]
    %v30 = vld [vmem:[#allocation2 + $0x4] sm:$0xf]
    %v31 = vunpack.c.l.bf16 %v29
    %v32 = vunpack.c.l.bf16 %v30
    %v33 = vld [vmem:[%s1] sm:$0x1]
    %v34 = vld [vmem:[%s2] sm:$0x1]
    %vm35 = vcmask 261120
    %v36 = vsel %vm35, %v31, 0.0
    %37 = vadd.xlane.f32.xlu0 %v36
    %v38 = vpop.xlane.xlu0 %37
    %v39 = vsel %vm35, %v32, 0.0
    %40 = vadd.xlane.f32.xlu0 %v39
    %v41 = vpop.xlane.xlu0 %40
    %v42 = vrcp.pop 32.0
    %v43 = vmul.f32 %v38, %v42
    %v44 = vmul.f32 %v41, %v42
    %v45 = vsub.f32 %v31, %v43
    %v46 = vsub.f32 %v32, %v44
    %v47 = vmul.f32 %v45, %v45
    %v48 = vmul.f32 %v46, %v46
    %v49 = vsel %vm35, %v47, 0.0
    %50 = vadd.xlane.f32.xlu0 %v49
    %v51 = vpop.xlane.xlu0 %50
    %v52 = vsel %vm35, %v48, 0.0
    %53 = vadd.xlane.f32.xlu0 %v52
    %v54 = vpop.xlane.xlu0 %53
    %v55 = vmul.f32 %v51, %v42
    %v56 = vmul.f32 %v54, %v42
    %v57 = vadd.f32 %v55, 1e-12
    %v58 = vadd.f32 %v56, 1e-12
    %v59 = vrsqrt.pop %v57
    %v60 = vrsqrt.pop %v58
    %v61 = vmul.f32 %v45, %v59
    %v62 = vmul.f32 %v46, %v60
    %v64 = vlaneseq
    %v65 = vshrl.u32 %v64, 7
    %v66 = vsub.s32 0, %v65
    %v67 = vrot.slane %v33, %v66
    %v69 = vmul.f32 %v61, %v67
    %v70 = vmul.f32 %v62, %v67
    %v72 = vlaneseq
    %v73 = vshrl.u32 %v72, 7
    %v74 = vsub.s32 0, %v73
    %v75 = vrot.slane %v34, %v74
    %v77 = vadd.f32 %v69, %v75
    %v78 = vadd.f32 %v70, %v75
    %v79 = vpack.c.bf16 %v78, %v77
    %v81 = vunpack.c.l.b16 %v79
    %v82 = vunpack.c.h.b16 %v79
    %v83 = vpack.c.b16 %v81, %v81
    %v84 = vpack.c.b16 %v82, %v82
    %vm87 = vcmask 257024
    %88 = vst.msk [vmem:[#allocation5] sm:$0xf] %vm87, %v83
    %89 = vst.msk [vmem:[#allocation5 + $0x4] sm:$0xf] %vm87, %v84
    // Predicated region
    $region18: #{tpu_custom_call.1} parent=1 // pred_check
      _
    $region19: #{tpu_custom_call.1} parent=1 // pred_check_branch
      %91 = sbr.rel (0) target = $region21
    $region20: #{tpu_custom_call.1} parent=1 // pred_region
      %s93 = ssub.s32 128, 128
      %94 = vsyncadd [#allocation4], %s93
      %s95 = sshll.u32 [#allocation5], 4
      %s96 = int_to_ptr.vmem [resolvable:$true] %s95
      %101 = dma.vmem_to_hbm [thread:$0]  %s96, 128, %s3, [#allocation4], 64, 64, 4
    $region21: #{tpu_custom_call.1} parent=1 // pred_fallthru
      _
    // Predicated region
    $region22: #{tpu_custom_call.1} parent=1 // pred_check
      _
    $region23: #{tpu_custom_call.1} parent=1 // pred_check_branch
      %103 = sbr.rel (0) target = $region25
    $region24: #{tpu_custom_call.1} parent=1 // pred_region
      %104 = dma.done [#allocation4], 128
    $region25: #{tpu_custom_call.1} parent=1 // pred_fallthru
      _
    %105 = vsyncpa [#allocation3], 1
    %106 = vsyncpa [#allocation4], 1

</llo_original>
